<compile_context>
chip_gen: v7x
topology: tpu7x:2x2x1
jax: 0.10.0
libtpu: 0.0.40
codegen_flags: <defaults>
</compile_context>

<pallas_src>
import jax
import jax.numpy as jnp
from jax import lax
from jax.experimental import pallas as pl
from jax.experimental.pallas import tpu as pltpu


_INV_SQRT2 = 0.7071067811865476
_LANE = 128


def _round_up(x, m):
    return (x + m - 1) // m * m


def _cdiv(a, b):
    return -(-a // b)


def _sublane(dtype):
    # vreg sublane packing: f32 -> 8, bf16 -> 16, int8/fp8 -> 32
    return max(8, 8 * (4 // jnp.dtype(dtype).itemsize))


def _vmem_limit_bytes():
    """Per-generation scoped-VMEM budget (~100 MiB on 128 MiB parts, ~52 MiB on v7x)."""
    cap = 64 * 1024 * 1024  # conservative fallback (v7x per-TC VMEM)
    try:
        cap = int(pltpu.get_tpu_info().vmem_capacity_bytes)
    except Exception:
        pass
    return min(int(cap * 0.82), 100 * 1024 * 1024)


def _gelu_exact(h):
    # Exact GELU (matches torch nn.GELU default): 0.5*x*(1+erf(x/sqrt(2)))
    return 0.5 * h * (1.0 + lax.erf(h * _INV_SQRT2))


# ----------------------------------------------------------------------------
# Kernels
# ----------------------------------------------------------------------------
def _mlp_resident_kernel(x_ref, w1_ref, b1_ref, w2_ref, b2_ref, o_ref, acc_ref):
    """Weights fully VMEM-resident; in-kernel loop over hidden chunks.

    x_ref:  (tm, cin_p)          native dtype
    w1_ref: (nk, cin_p, th)      chunk-major W1^T (loaded once, constant index map)
    b1_ref: (nk, 1, th)
    w2_ref: (nk, th, cout_p)     chunk-major W2^T
    b2_ref: (1, cout_p)
    o_ref:  (tm, cout_p)
    acc_ref:(tm, cout_p) f32
    """
    nk = w1_ref.shape[0]
    acc_ref[...] = jnp.zeros_like(acc_ref)

    def chunk(c, carry):
        h = jnp.dot(x_ref[...], w1_ref[c], preferred_element_type=jnp.float32)
        h = h + b1_ref[c].astype(jnp.float32)
        h = _gelu_exact(h)
        # Dropout with p=0.0 is the identity -> no-op.
        acc_ref[...] += jnp.dot(h.astype(w2_ref.dtype), w2_ref[c],
                                preferred_element_type=jnp.float32)
        return carry

    lax.fori_loop(0, nk, chunk, 0, unroll=nk <= 4)
    o_ref[...] = (acc_ref[...] + b2_ref[...].astype(jnp.float32)).astype(o_ref.dtype)


def _mlp_stream_kernel(x_ref, w1_ref, b1_ref, w2_ref, b2_ref, o_ref, acc_ref):
    """Hidden dim streamed over grid axis 1 ("arbitrary"); f32 VMEM accumulator.

    x_ref:  (tm, cin_p)     resident over k (block index unchanged)
    w1_ref: (cin_p, th)     contiguous hidden chunk of W1^T
    b1_ref: (1, th)
    w2_ref: (th, cout_p)    contiguous hidden chunk of W2^T
    b2_ref: (1, cout_p)
    """
    k = pl.program_id(1)

    @pl.when(k == 0)
    def _init():
        acc_ref[...] = jnp.zeros_like(acc_ref)

    h = jnp.dot(x_ref[...], w1_ref[...], preferred_element_type=jnp.float32)
    h = h + b1_ref[...].astype(jnp.float32)
    h = _gelu_exact(h)
    acc_ref[...] += jnp.dot(h.astype(w2_ref.dtype), w2_ref[...],
                            preferred_element_type=jnp.float32)

    @pl.when(k == pl.num_programs(1) - 1)
    def _finalize():
        o_ref[...] = (acc_ref[...] + b2_ref[...].astype(jnp.float32)).astype(o_ref.dtype)


# ----------------------------------------------------------------------------
# Parameter preparation (hoist out of the per-call path)
# ----------------------------------------------------------------------------
def prepare_mlp_params(w1, b1, w2, b2, *, th=None, compute_dtype=None, vmem_limit=None):
    """Transpose to (in, out), pad channel dims to 128 lanes, reshape chunk-major.

    PyTorch nn.Linear convention: w1 (H, C_in), w2 (C_out, H).
    Set compute_dtype=jnp.bfloat16 to cast weights once at load time (full-rate MXU,
    half the weight HBM traffic; on v7x consider fp8 for W1/W2).
    """
    if compute_dtype is not None:
        w1 = w1.astype(compute_dtype)
        b1 = b1.astype(compute_dtype)
        w2 = w2.astype(compute_dtype)
        b2 = b2.astype(compute_dtype)

    if vmem_limit is None:
        vmem_limit = _vmem_limit_bytes()

    H, C_in = w1.shape
    C_out = w2.shape[0]

    # Large hidden chunks: fewer grid steps / accumulator read-modify-write passes.
    if th is None:
        th = 2048 if vmem_limit >= 80 * 1024 * 1024 else 1024

    cin_p = _round_up(C_in, _LANE)
    cout_p = _round_up(C_out, _LANE)
    th_eff = min(th, _round_up(H, _LANE))
    hp = _round_up(H, th_eff)
    nk = hp // th_eff

    w1t = jnp.pad(jnp.transpose(w1), ((0, cin_p - C_in), (0, hp - H)))
    # Chunk-major: each W1 hidden-chunk (cin_p, th) is fully contiguous in HBM.
    w1c = jnp.transpose(w1t.reshape(cin_p, nk, th_eff), (1, 0, 2))
    b1c = jnp.pad(b1, (0, hp - H)).reshape(nk, 1, th_eff)
    w2t = jnp.pad(jnp.transpose(w2), ((0, hp - H), (0, cout_p - C_out)))
    w2c = w2t.reshape(nk, th_eff, cout_p)
    b2r = jnp.pad(b2[None, :], ((0, 0), (0, cout_p - C_out)))

    meta = dict(C_in=C_in, H=H, C_out=C_out, cin_p=cin_p, hp=hp, cout_p=cout_p,
                th=th_eff, nk=nk, vmem_limit=vmem_limit)
    return (w1c, b1c, w2c, b2r), meta


# ----------------------------------------------------------------------------
# Forward wrapper
# ----------------------------------------------------------------------------
def mlp_pallas_prepared(x, prepared, *, tm=None):
    """x: (..., C_in) -> (..., C_out) using pre-transposed / pre-padded params."""
    (w1c, b1c, w2c, b2r), meta = prepared
    orig_shape = x.shape
    C_in, C_out = meta["C_in"], meta["C_out"]
    cin_p, cout_p, th, nk = meta["cin_p"], meta["cout_p"], meta["th"], meta["nk"]
    vmem_limit = meta["vmem_limit"]
    assert orig_shape[-1] == C_in

    wdtype = w1c.dtype
    wbytes = jnp.dtype(wdtype).itemsize
    # If weights are narrower (e.g. bf16), cast x so the MXU runs at full rate.
    x_in = x.astype(wdtype) if wbytes < jnp.dtype(x.dtype).itemsize else x
    dtype_bytes = jnp.dtype(x_in.dtype).itemsize

    M = 1
    for d in orig_shape[:-1]:
        M *= d
    sub = _sublane(x_in.dtype)

    # ---- row-tile choice (big tiles; shrink only if the tile set overflows VMEM) --
    if tm is None:
        tm = 1024 if vmem_limit >= 80 * 1024 * 1024 else 512

    def _stream_bytes(tm_):
        return (2 * tm_ * (cin_p + cout_p) * dtype_bytes          # x / out, double-buffered
                + 2 * (cin_p * th + th + th * cout_p + cout_p) * wbytes  # weight chunks
                + tm_ * cout_p * 4                                 # f32 accumulator
                + tm_ * th * (4 + wbytes))                         # fc1/GELU intermediate

    tm_eff = min(tm, _round_up(M, sub))
    while tm_eff > sub and _stream_bytes(tm_eff) > vmem_limit:
        tm_eff = max(sub, _round_up(tm_eff // 2, sub))

    n_tiles = _cdiv(M, tm_eff)
    if n_tiles == 1 and M >= 512:
        n_tiles = 2  # keep both v7x TensorCores busy on the "parallel" axis
    tm_eff = _round_up(_cdiv(M, n_tiles), sub)   # balance tiles
    mp = n_tiles * tm_eff

    # ---- hold weights fully resident in VMEM when they fit the budget ------------
    weight_bytes = (w1c.size + b1c.size + w2c.size + b2r.size) * wbytes
    resident_bytes = (2 * weight_bytes                              # double-buffered blocks
                      + 2 * tm_eff * (cin_p + cout_p) * dtype_bytes
                      + tm_eff * cout_p * 4
                      + tm_eff * th * (4 + wbytes))
    use_resident = resident_bytes <= vmem_limit

    x2d = x_in.reshape(M, C_in)
    if mp != M or cin_p != C_in:
        x2d = jnp.pad(x2d, ((0, mp - M), (0, cin_p - C_in)))

    if use_resident:
        out2d = pl.pallas_call(
            _mlp_resident_kernel,
            out_shape=jax.ShapeDtypeStruct((mp, cout_p), x.dtype),
            grid_spec=pltpu.PrefetchScalarGridSpec(
                num_scalar_prefetch=0,
                grid=(n_tiles,),
                in_specs=[
                    pl.BlockSpec((tm_eff, cin_p), lambda i: (i, 0)),       # x rows
                    pl.BlockSpec((nk, cin_p, th), lambda i: (0, 0, 0)),    # W1^T (resident)
                    pl.BlockSpec((nk, 1, th), lambda i: (0, 0, 0)),        # b1 (resident)
                    pl.BlockSpec((nk, th, cout_p), lambda i: (0, 0, 0)),   # W2^T (resident)
                    pl.BlockSpec((1, cout_p), lambda i: (0, 0)),           # b2
                ],
                out_specs=pl.BlockSpec((tm_eff, cout_p), lambda i: (i, 0)),
                scratch_shapes=[pltpu.VMEM((tm_eff, cout_p), jnp.float32)],
            ),
            compiler_params=pltpu.CompilerParams(
                dimension_semantics=("parallel",),
                vmem_limit_bytes=vmem_limit,
            ),
        )(x2d, w1c, b1c, w2c, b2r)
    else:
        out2d = pl.pallas_call(
            _mlp_stream_kernel,
            out_shape=jax.ShapeDtypeStruct((mp, cout_p), x.dtype),
            grid_spec=pltpu.PrefetchScalarGridSpec(
                num_scalar_prefetch=0,
                grid=(n_tiles, nk),
                in_specs=[
                    pl.BlockSpec((tm_eff, cin_p), lambda i, k: (i, 0)),       # x (resident over k)
                    pl.BlockSpec((None, cin_p, th), lambda i, k: (k, 0, 0)),  # W1^T chunk (contig.)
                    pl.BlockSpec((None, 1, th), lambda i, k: (k, 0, 0)),      # b1 chunk
                    pl.BlockSpec((None, th, cout_p), lambda i, k: (k, 0, 0)), # W2^T chunk (contig.)
                    pl.BlockSpec((1, cout_p), lambda i, k: (0, 0)),           # b2
                ],
                out_specs=pl.BlockSpec((tm_eff, cout_p), lambda i, k: (i, 0)),
                scratch_shapes=[pltpu.VMEM((tm_eff, cout_p), jnp.float32)],
            ),
            compiler_params=pltpu.CompilerParams(
                dimension_semantics=("parallel", "arbitrary"),
                vmem_limit_bytes=vmem_limit,
            ),
        )(x2d, w1c, b1c, w2c, b2r)

    out_shape = orig_shape[:-1] + (C_out,)
    if mp == M and cout_p == C_out:
        return out2d.reshape(out_shape)          # no padding -> no extra HBM pass
    return out2d[:M, :C_out].reshape(out_shape)


def mlp_pallas(x, w1, b1, w2, b2, *, tm=None, th=None, compute_dtype=None):
    """Convenience wrapper; in production hoist prepare_mlp_params out of the hot path."""
    prepared = prepare_mlp_params(w1, b1, w2, b2, th=th, compute_dtype=compute_dtype)
    return mlp_pallas_prepared(x, prepared, tm=tm)


def _reference_mlp(x, w1, b1, w2, b2):
    h = jnp.einsum("bnc,hc->bnh", x, w1) + b1
    h = jax.nn.gelu(h, approximate=False)
    return jnp.einsum("bnh,oh->bno", h, w2) + b2


if __name__ == "__main__":
    # Small shapes: batch=2, seq=8, in_features=32, hidden=64, out_features=32
    B, N, C_in, H, C_out = 2, 8, 32, 64, 32

    key = jax.random.PRNGKey(0)
    kx, k1, k2, k3, k4 = jax.random.split(key, 5)

    x = jax.random.normal(kx, (B, N, C_in), dtype=jnp.float32)

    # Deterministic synthetic params (nn.Linear shapes: (out, in) weights, (out,) biases)
    bound1 = 1.0 / jnp.sqrt(C_in)
    bound2 = 1.0 / jnp.sqrt(H)
    w1 = jax.random.uniform(k1, (H, C_in), minval=-bound1, maxval=bound1, dtype=jnp.float32)
    b1 = jax.random.uniform(k2, (H,), minval=-bound1, maxval=bound1, dtype=jnp.float32)
    w2 = jax.random.uniform(k3, (C_out, H), minval=-bound2, maxval=bound2, dtype=jnp.float32)
    b2 = jax.random.uniform(k4, (C_out,), minval=-bound2, maxval=bound2, dtype=jnp.float32)

    # Hoist param prep (transpose + pad + chunk-major reshape) out of the forward path.
    prepared = prepare_mlp_params(w1, b1, w2, b2)
    out = mlp_pallas_prepared(x, prepared)
    out = jax.block_until_ready(out)

    ref = _reference_mlp(x, w1, b1, w2, b2)
    assert out.shape == (B, N, C_out)
    assert jnp.allclose(out, ref, atol=1e-5, rtol=1e-5), "mismatch vs reference"

    print("KERNEL_OK")
</pallas_src>

<mosaic_0001>
module attributes {stable_mosaic.version = 11 : i64} {
  func.func @_mlp_resident_kernel(%arg0: i32, %arg1: memref<16x128xf32, #tpu.memory_space<vmem>>, %arg2: memref<1x128x128xf32, #tpu.memory_space<vmem>>, %arg3: memref<1x1x128xf32, #tpu.memory_space<vmem>>, %arg4: memref<1x128x128xf32, #tpu.memory_space<vmem>>, %arg5: memref<1x128xf32, #tpu.memory_space<vmem>>, %arg6: memref<16x128xf32, #tpu.memory_space<vmem>>, %arg7: memref<16x128xf32, #tpu.memory_space<vmem>>) attributes {dimension_semantics = [#tpu.dimension_semantics<parallel>], iteration_bounds = array<i64: 1>, scalar_prefetch = 0 : i64, scratch_operands = 1 : i64, tpu.core_type = #tpu.core_type<tc>, window_params = [{transform_indices = @transform_0, window_bounds = array<i64: 16, 128>}, {pipeline_mode = #tpu.pipeline_mode<synchronous>, transform_indices = @transform_1, window_bounds = array<i64: 1, 128, 128>}, {pipeline_mode = #tpu.pipeline_mode<synchronous>, transform_indices = @transform_2, window_bounds = array<i64: 1, 1, 128>}, {pipeline_mode = #tpu.pipeline_mode<synchronous>, transform_indices = @transform_3, window_bounds = array<i64: 1, 128, 128>}, {pipeline_mode = #tpu.pipeline_mode<synchronous>, transform_indices = @transform_4, window_bounds = array<i64: 1, 128>}, {transform_indices = @transform_5, window_bounds = array<i64: 16, 128>}]} {
    %cst = arith.constant 0.000000e+00 : f32
    %0 = vector.broadcast %cst : f32 to vector<16x128xf32>
    %c0 = arith.constant 0 : index
    %c0_0 = arith.constant 0 : index
    %1 = vector.load %arg7[%c0, %c0_0] : memref<16x128xf32, #tpu.memory_space<vmem>>, vector<16x128xf32>
    tpu.vector_store %arg7[%c0, %c0_0], %0 {strides = array<i32>} : memref<16x128xf32, #tpu.memory_space<vmem>>, vector<16x128xf32>,
    %c0_i32 = arith.constant 0 : i32
    %c0_1 = arith.constant 0 : index
    %c0_2 = arith.constant 0 : index
    %2 = vector.load %arg1[%c0_1, %c0_2] : memref<16x128xf32, #tpu.memory_space<vmem>>, vector<16x128xf32>
    %3 = arith.index_cast %c0_i32 : i32 to index
    %c0_3 = arith.constant 0 : index
    %c0_4 = arith.constant 0 : index
    %4 = vector.load %arg2[%3, %c0_3, %c0_4] : memref<1x128x128xf32, #tpu.memory_space<vmem>>, vector<1x128x128xf32>
    %5 = vector.shape_cast %4 : vector<1x128x128xf32> to vector<128x128xf32>
    %cst_5 = arith.constant dense<0.000000e+00> : vector<16x128xf32>
    %6 = tpu.matmul %2, %5, %cst_5 {dimension_numbers = #tpu.dot_dimension_numbers<[1], [0], [0], [1], [0, 0, 1, 1], [], []>} : vector<16x128xf32>, vector<128x128xf32>, vector<16x128xf32> -> vector<16x128xf32>
    %7 = arith.index_cast %c0_i32 : i32 to index
    %c0_6 = arith.constant 0 : index
    %c0_7 = arith.constant 0 : index
    %8 = vector.load %arg3[%7, %c0_6, %c0_7] : memref<1x1x128xf32, #tpu.memory_space<vmem>>, vector<1x1x128xf32>
    %9 = vector.shape_cast %8 : vector<1x1x128xf32> to vector<1x128xf32>
    %10 = vector.broadcast %9 : vector<1x128xf32> to vector<16x128xf32>
    %11 = arith.addf %6, %10 : vector<16x128xf32>
    %cst_8 = arith.constant 5.000000e-01 : f32
    %12 = vector.broadcast %cst_8 : f32 to vector<16x128xf32>
    %13 = arith.mulf %12, %11 : vector<16x128xf32>
    %cst_9 = arith.constant 0.707106769 : f32
    %14 = vector.broadcast %cst_9 : f32 to vector<16x128xf32>
    %15 = arith.mulf %11, %14 : vector<16x128xf32>
    %16 = math.erf %15 : vector<16x128xf32>
    %cst_10 = arith.constant 1.000000e+00 : f32
    %17 = vector.broadcast %cst_10 : f32 to vector<16x128xf32>
    %18 = arith.addf %17, %16 : vector<16x128xf32>
    %19 = arith.mulf %13, %18 : vector<16x128xf32>
    %c0_11 = arith.constant 0 : index
    %c0_12 = arith.constant 0 : index
    %20 = vector.load %arg7[%c0_11, %c0_12] : memref<16x128xf32, #tpu.memory_space<vmem>>, vector<16x128xf32>
    %21 = arith.index_cast %c0_i32 : i32 to index
    %c0_13 = arith.constant 0 : index
    %c0_14 = arith.constant 0 : index
    %22 = vector.load %arg4[%21, %c0_13, %c0_14] : memref<1x128x128xf32, #tpu.memory_space<vmem>>, vector<1x128x128xf32>
    %23 = vector.shape_cast %22 : vector<1x128x128xf32> to vector<128x128xf32>
    %cst_15 = arith.constant dense<0.000000e+00> : vector<16x128xf32>
    %24 = tpu.matmul %19, %23, %cst_15 {dimension_numbers = #tpu.dot_dimension_numbers<[1], [0], [0], [1], [0, 0, 1, 1], [], []>} : vector<16x128xf32>, vector<128x128xf32>, vector<16x128xf32> -> vector<16x128xf32>
    %25 = arith.addf %20, %24 : vector<16x128xf32>
    %c0_16 = arith.constant 0 : index
    %c0_17 = arith.constant 0 : index
    %26 = vector.load %arg7[%c0_16, %c0_17] : memref<16x128xf32, #tpu.memory_space<vmem>>, vector<16x128xf32>
    tpu.vector_store %arg7[%c0_16, %c0_17], %25 {strides = array<i32>} : memref<16x128xf32, #tpu.memory_space<vmem>>, vector<16x128xf32>,
    %c1_i32 = arith.constant 1 : i32
    %c0_18 = arith.constant 0 : index
    %c0_19 = arith.constant 0 : index
    %27 = vector.load %arg7[%c0_18, %c0_19] : memref<16x128xf32, #tpu.memory_space<vmem>>, vector<16x128xf32>
    %c0_20 = arith.constant 0 : index
    %c0_21 = arith.constant 0 : index
    %28 = vector.load %arg5[%c0_20, %c0_21] : memref<1x128xf32, #tpu.memory_space<vmem>>, vector<1x128xf32>
    %29 = vector.broadcast %28 : vector<1x128xf32> to vector<16x128xf32>
    %30 = arith.addf %27, %29 : vector<16x128xf32>
    %c0_22 = arith.constant 0 : index
    %c0_23 = arith.constant 0 : index
    %31 = vector.load %arg6[%c0_22, %c0_23] : memref<16x128xf32, #tpu.memory_space<vmem>>, vector<16x128xf32>
    tpu.vector_store %arg6[%c0_22, %c0_23], %30 {strides = array<i32>} : memref<16x128xf32, #tpu.memory_space<vmem>>, vector<16x128xf32>,
    return
  }
  func.func @transform_0(%arg0: i32) -> (i32, i32) {
    %c0_i32 = arith.constant 0 : i32
    %c0_i32_0 = arith.constant 0 : i32
    return %arg0, %c0_i32 : i32, i32
  }
  func.func @transform_1(%arg0: i32) -> (i32, i32, i32) {
    %c0_i32 = arith.constant 0 : i32
    %c0_i32_0 = arith.constant 0 : i32
    %c0_i32_1 = arith.constant 0 : i32
    %c0_i32_2 = arith.constant 0 : i32
    return %c0_i32, %c0_i32_0, %c0_i32_1 : i32, i32, i32
  }
  func.func @transform_2(%arg0: i32) -> (i32, i32, i32) {
    %c0_i32 = arith.constant 0 : i32
    %c0_i32_0 = arith.constant 0 : i32
    %c0_i32_1 = arith.constant 0 : i32
    %c0_i32_2 = arith.constant 0 : i32
    return %c0_i32, %c0_i32_0, %c0_i32_1 : i32, i32, i32
  }
  func.func @transform_3(%arg0: i32) -> (i32, i32, i32) {
    %c0_i32 = arith.constant 0 : i32
    %c0_i32_0 = arith.constant 0 : i32
    %c0_i32_1 = arith.constant 0 : i32
    %c0_i32_2 = arith.constant 0 : i32
    return %c0_i32, %c0_i32_0, %c0_i32_1 : i32, i32, i32
  }
  func.func @transform_4(%arg0: i32) -> (i32, i32) {
    %c0_i32 = arith.constant 0 : i32
    %c0_i32_0 = arith.constant 0 : i32
    %c0_i32_1 = arith.constant 0 : i32
    return %c0_i32, %c0_i32_0 : i32, i32
  }
  func.func @transform_5(%arg0: i32) -> (i32, i32) {
    %c0_i32 = arith.constant 0 : i32
    %c0_i32_0 = arith.constant 0 : i32
    return %arg0, %c0_i32 : i32, i32
  }
}

</mosaic_0001>

<llo_original>
// kernel: tpu_custom_call.1
$region0: #{tpu_custom_call.1}
  #allocation0 [shape = 'u32[]', space=smem, size = 0x4, offset = 0x4, fixed_abs, tag = 'smem constant byte address 0x4 - core index']
  #allocation1 [shape = 'u32[144,128]{1,0:T(1,128)}', space=vmem, size = 0x12000, scoped, tag = 'internal scratch']
  #allocation2 [shape = 'f32[16,128]{1,0:T(8,128)}', space=vmem, size = 0x2000, scoped, tag = 'scratch operand']
  %s0 = inlined_call_operand.hbm [shape: f32[16,128], index: 0, kind: input, shape index: {}]
  %s1 = inlined_call_operand.hbm [shape: f32[1,128,128], index: 1, kind: input, shape index: {}]
  %s2 = inlined_call_operand.vmem [shape: f32[1,1,128], index: 2, kind: input, shape index: {}]
  %s3 = inlined_call_operand.hbm [shape: f32[1,128,128], index: 3, kind: input, shape index: {}]
  %s4 = inlined_call_operand.vmem [shape: f32[1,128], index: 4, kind: input, shape index: {}]
  %s5 = inlined_call_operand.hbm [shape: f32[16,128], index: 5, kind: output, shape index: {}]
  %s6 = sld [smem:[#allocation0]]
  $region42: #{tpu_custom_call.1} parent=0
    _
  %s8 = ssub.s32 1, %s6
  %s9 = scalar_select 0, %s8, %s6
  $region1: #{tpu_custom_call.1} parent=0
    #allocation3 [shape = 'u8[8192]{0}', space=vmem, size = 0x2000, scoped, tag = 'input window, operand 0, single buffered']
    #allocation4 [shape = 's32[1]{0}', space=sflag, size = 0x4, scoped, tag = 'scoped memory for tpu_custom_call.1']
    #allocation5 [shape = 's32[1]{0}', space=sflag, size = 0x4, scoped, tag = 'scoped memory for tpu_custom_call.1']
    #allocation6 [shape = 'u8[65536]{0}', space=vmem, size = 0x10000, scoped, tag = 'input window, operand 1, single buffered']
    #allocation7 [shape = 's32[1]{0}', space=sflag, size = 0x4, scoped, tag = 'scoped memory for tpu_custom_call.1']
    #allocation8 [shape = 'u8[65536]{0}', space=vmem, size = 0x10000, scoped, tag = 'input window, operand 3, single buffered']
    #allocation9 [shape = 'u8[8192]{0}', space=vmem, size = 0x2000, scoped, tag = 'output window, operand 0, single buffered']
    %10 = vsyncpa [#allocation4], 0
    %11 = vsyncpa [#allocation7], 0
    %12 = vsyncpa [#allocation5], 0
    // Predicated region
    $region2: #{tpu_custom_call.1} parent=1 // pred_check
      _
    $region3: #{tpu_custom_call.1} parent=1 // pred_check_branch
      %14 = sbr.rel (0) target = $region5
    $region4: #{tpu_custom_call.1} parent=1 // pred_region
      %s16 = ssub.s32 256, 256
      %17 = vsyncadd [#allocation4], %s16
      %s18 = sshll.u32 [#allocation3], 4
      %s19 = int_to_ptr.vmem [resolvable:$true] %s18
      %24 = dma.hbm_to_vmem [thread:$0]  %s0, 256, %s19, [#allocation4], 128, 128, 8
    $region5: #{tpu_custom_call.1} parent=1 // pred_fallthru
      _
    // Predicated region
    $region6: #{tpu_custom_call.1} parent=1 // pred_check
      _
    $region7: #{tpu_custom_call.1} parent=1 // pred_check_branch
      %26 = sbr.rel (0) target = $region9
    $region8: #{tpu_custom_call.1} parent=1 // pred_region
      %s28 = ssub.s32 2048, 2048
      %29 = vsyncadd [#allocation7], %s28
      %s30 = sshll.u32 [#allocation6], 4
      %s31 = int_to_ptr.vmem [resolvable:$true] %s30
      %36 = dma.hbm_to_vmem [thread:$0]  %s1, 2048, %s31, [#allocation7], 128, 128, 8
    $region9: #{tpu_custom_call.1} parent=1 // pred_fallthru
      _
    // Predicated region
    $region10: #{tpu_custom_call.1} parent=1 // pred_check
      _
    $region11: #{tpu_custom_call.1} parent=1 // pred_check_branch
      %38 = sbr.rel (0) target = $region13
    $region12: #{tpu_custom_call.1} parent=1 // pred_region
      _
    $region13: #{tpu_custom_call.1} parent=1 // pred_fallthru
      _
    // Predicated region
    $region14: #{tpu_custom_call.1} parent=1 // pred_check
      _
    $region15: #{tpu_custom_call.1} parent=1 // pred_check_branch
      %40 = sbr.rel (0) target = $region17
    $region16: #{tpu_custom_call.1} parent=1 // pred_region
      %s42 = ssub.s32 2048, 2048
      %43 = vsyncadd [#allocation7], %s42
      %s44 = sshll.u32 [#allocation8], 4
      %s45 = int_to_ptr.vmem [resolvable:$true] %s44
      %50 = dma.hbm_to_vmem [thread:$0]  %s3, 2048, %s45, [#allocation7], 128, 128, 8
    $region17: #{tpu_custom_call.1} parent=1 // pred_fallthru
      _
    // Predicated region
    $region18: #{tpu_custom_call.1} parent=1 // pred_check
      _
    $region19: #{tpu_custom_call.1} parent=1 // pred_check_branch
      %52 = sbr.rel (0) target = $region21
    $region20: #{tpu_custom_call.1} parent=1 // pred_region
      _
    $region21: #{tpu_custom_call.1} parent=1 // pred_fallthru
      _
    // Predicated region
    $region22: #{tpu_custom_call.1} parent=1 // pred_check
      _
    $region23: #{tpu_custom_call.1} parent=1 // pred_check_branch
      %54 = sbr.rel (0) target = $region25
    $region24: #{tpu_custom_call.1} parent=1 // pred_region
      %55 = dma.done [#allocation4], 256
    $region25: #{tpu_custom_call.1} parent=1 // pred_fallthru
      _
    // Predicated region
    $region26: #{tpu_custom_call.1} parent=1 // pred_check
      _
    $region27: #{tpu_custom_call.1} parent=1 // pred_check_branch
      %57 = sbr.rel (0) target = $region29
    $region28: #{tpu_custom_call.1} parent=1 // pred_region
      %58 = dma.done [#allocation7], 2048
    $region29: #{tpu_custom_call.1} parent=1 // pred_fallthru
      _
    // Predicated region
    $region30: #{tpu_custom_call.1} parent=1 // pred_check
      _
    $region31: #{tpu_custom_call.1} parent=1 // pred_check_branch
      %60 = sbr.rel (0) target = $region33
    $region32: #{tpu_custom_call.1} parent=1 // pred_region
      %61 = dma.done [#allocation7], 2048
    $region33: #{tpu_custom_call.1} parent=1 // pred_fallthru
      _
    %62 = vst [vmem:[#allocation2] sm:$0xff] 0.0
    %63 = vst [vmem:[#allocation2 + $0x8] sm:$0xff] 0.0
    %v64 = vld [vmem:[#allocation3] sm:$0xff]
    %v65 = vld [vmem:[#allocation3 + $0x8] sm:$0xff]
    %v66 = vld [vmem:[#allocation6] sm:$0xff]
    %v67 = vld [vmem:[#allocation6 + $0x8] sm:$0xff]
    %v68 = vld [vmem:[#allocation6 + $0x10] sm:$0xff]
    %v69 = vld [vmem:[#allocation6 + $0x18] sm:$0xff]
    %v70 = vld [vmem:[#allocation6 + $0x20] sm:$0xff]
    %v71 = vld [vmem:[#allocation6 + $0x28] sm:$0xff]
    %v72 = vld [vmem:[#allocation6 + $0x30] sm:$0xff]
    %v73 = vld [vmem:[#allocation6 + $0x38] sm:$0xff]
    %v74 = vld [vmem:[#allocation6 + $0x40] sm:$0xff]
    %v75 = vld [vmem:[#allocation6 + $0x48] sm:$0xff]
    %v76 = vld [vmem:[#allocation6 + $0x50] sm:$0xff]
    %v77 = vld [vmem:[#allocation6 + $0x58] sm:$0xff]
    %v78 = vld [vmem:[#allocation6 + $0x60] sm:$0xff]
    %v79 = vld [vmem:[#allocation6 + $0x68] sm:$0xff]
    %v80 = vld [vmem:[#allocation6 + $0x70] sm:$0xff]
    %v81 = vld [vmem:[#allocation6 + $0x78] sm:$0xff]
    %v82 = vld [vmem:[%s2] sm:$0x1]
    %v84 = vlaneseq
    %v85 = vshrl.u32 %v84, 7
    %v86 = vsub.s32 0, %v85
    %v87 = vrot.slane %v82, %v86
    %89 = vmatprep.subr.mxu0 0.0
    %90 = vmatpush1.msra.mxu0 %v66
    %91 = vmatprep.subr.mxu0 0.0
    %92 = vmatpush1.msra.mxu0 %v67
    %93 = vmatprep.subr.mxu0 0.0
    %94 = vmatpush1.msra.mxu0 %v68
    %95 = vmatprep.subr.mxu0 0.0
    %96 = vmatpush1.msra.mxu0 %v69
    %97 = vmatprep.subr.mxu0 0.0
    %98 = vmatpush1.msra.mxu0 %v70
    %99 = vmatprep.subr.mxu0 0.0
    %100 = vmatpush1.msra.mxu0 %v71
    %101 = vmatprep.subr.mxu0 0.0
    %102 = vmatpush1.msra.mxu0 %v72
    %103 = vmatprep.subr.mxu0 0.0
    %104 = vmatpush1.msra.mxu0 %v73
    %105 = vmatprep.subr.mxu0 0.0
    %106 = vmatpush1.msra.mxu0 %v74
    %107 = vmatprep.subr.mxu0 0.0
    %108 = vmatpush1.msra.mxu0 %v75
    %109 = vmatprep.subr.mxu0 0.0
    %110 = vmatpush1.msra.mxu0 %v76
    %111 = vmatprep.subr.mxu0 0.0
    %112 = vmatpush1.msra.mxu0 %v77
    %113 = vmatprep.subr.mxu0 0.0
    %114 = vmatpush1.msra.mxu0 %v78
    %115 = vmatprep.subr.mxu0 0.0
    %116 = vmatpush1.msra.mxu0 %v79
    %117 = vmatprep.subr.mxu0 0.0
    %118 = vmatpush1.msra.mxu0 %v80
    %119 = vmatprep.subr.mxu0 0.0
    %120 = vmatpush1.msra.mxu0 %v81
    %121 = vmatprep.subr.mxu0 0.0
    %122 = vmatpush1.msra.mxu0 0.0
    %123 = vmatprep.subr.mxu0 0.0
    %124 = vmatpush1.msra.mxu0 0.0
    %125 = vmatprep.subr.mxu0 0.0
    %126 = vmatpush1.msra.mxu0 0.0
    %127 = vmatprep.subr.mxu0 0.0
    %128 = vmatpush1.msra.mxu0 0.0
    %129 = vmatprep.subr.mxu0 0.0
    %130 = vmatpush1.msra.mxu0 0.0
    %131 = vmatprep.subr.mxu0 0.0
    %132 = vmatpush1.msra.mxu0 0.0
    %133 = vmatprep.subr.mxu0 0.0
    %134 = vmatpush1.msra.mxu0 0.0
    %135 = vmatprep.subr.mxu0 0.0
    %136 = vmatpush1.msra.mxu0 0.0
    %137 = vmatprep.subr.mxu0 0.0
    %138 = vmatpush1.msra.mxu0 0.0
    %139 = vmatprep.subr.mxu0 0.0
    %140 = vmatpush1.msra.mxu0 0.0
    %141 = vmatprep.subr.mxu0 0.0
    %142 = vmatpush1.msra.mxu0 0.0
    %143 = vmatprep.subr.mxu0 0.0
    %144 = vmatpush1.msra.mxu0 0.0
    %145 = vmatprep.subr.mxu0 0.0
    %146 = vmatpush1.msra.mxu0 0.0
    %147 = vmatprep.subr.mxu0 0.0
    %148 = vmatpush1.msra.mxu0 0.0
    %149 = vmatprep.subr.mxu0 0.0
    %150 = vmatpush1.msra.mxu0 0.0
    %151 = vmatprep.subr.mxu0 0.0
    %152 = vmatpush1.msra.mxu0 0.0
    %153 = vmatprep.mubr.f32.mxu0 0.0
    %154 = vmatmul.mubr.f32.gmra.mrb[0].mxu0 %v64
    %v155 = vpop.f32.mrb[0].mxu0
    %v156 = vadd.f32 %v87, %v155
    %v157 = vpop.f32.mrb[0].mxu0
    %158 = vmatprep.mubr.f32.mxu0 0.0
    %159 = vmatmul.mubr.f32.gmra.mrb[0].mxu0 %v65
    %v160 = vpop.f32.mrb[0].mxu0
    %v161 = vadd.f32 %v87, %v160
    %v162 = vpop.f32.mrb[0].mxu0
    %163 = vdwg.mxu0
    %v164 = vmul.f32 %v156, 0.5
    %v165 = vmul.f32 %v161, 0.5
    %v166 = vmul.f32 %v156, 0.70710677
    %v167 = vmul.f32 %v161, 0.70710677
    %v168 = verf.f32.pop %v166
    %v169 = verf.f32.pop %v167
    %v170 = vadd.f32 %v168, 1.0
    %v171 = vadd.f32 %v169, 1.0
    %v172 = vmul.f32 %v164, %v170
    %v173 = vmul.f32 %v165, %v171
    %v174 = vld [vmem:[#allocation2] sm:$0xff]
    %v175 = vld [vmem:[#allocation2 + $0x8] sm:$0xff]
    %v176 = vld [vmem:[#allocation8] sm:$0xff]
    %v177 = vld [vmem:[#allocation8 + $0x8] sm:$0xff]
    %v178 = vld [vmem:[#allocation8 + $0x10] sm:$0xff]
    %v179 = vld [vmem:[#allocation8 + $0x18] sm:$0xff]
    %v180 = vld [vmem:[#allocation8 + $0x20] sm:$0xff]
    %v181 = vld [vmem:[#allocation8 + $0x28] sm:$0xff]
    %v182 = vld [vmem:[#allocation8 + $0x30] sm:$0xff]
    %v183 = vld [vmem:[#allocation8 + $0x38] sm:$0xff]
    %v184 = vld [vmem:[#allocation8 + $0x40] sm:$0xff]
    %v185 = vld [vmem:[#allocation8 + $0x48] sm:$0xff]
    %v186 = vld [vmem:[#allocation8 + $0x50] sm:$0xff]
    %v187 = vld [vmem:[#allocation8 + $0x58] sm:$0xff]
    %v188 = vld [vmem:[#allocation8 + $0x60] sm:$0xff]
    %v189 = vld [vmem:[#allocation8 + $0x68] sm:$0xff]
    %v190 = vld [vmem:[#allocation8 + $0x70] sm:$0xff]
    %v191 = vld [vmem:[#allocation8 + $0x78] sm:$0xff]
    %192 = vmatprep.subr.mxu0 0.0
    %193 = vmatpush1.msra.mxu0 %v176
    %194 = vmatprep.subr.mxu0 0.0
    %195 = vmatpush1.msra.mxu0 %v177
    %196 = vmatprep.subr.mxu0 0.0
    %197 = vmatpush1.msra.mxu0 %v178
    %198 = vmatprep.subr.mxu0 0.0
    %199 = vmatpush1.msra.mxu0 %v179
    %200 = vmatprep.subr.mxu0 0.0
    %201 = vmatpush1.msra.mxu0 %v180
    %202 = vmatprep.subr.mxu0 0.0
    %203 = vmatpush1.msra.mxu0 %v181
    %204 = vmatprep.subr.mxu0 0.0
    %205 = vmatpush1.msra.mxu0 %v182
    %206 = vmatprep.subr.mxu0 0.0
    %207 = vmatpush1.msra.mxu0 %v183
    %208 = vmatprep.subr.mxu0 0.0
    %209 = vmatpush1.msra.mxu0 %v184
    %210 = vmatprep.subr.mxu0 0.0
    %211 = vmatpush1.msra.mxu0 %v185
    %212 = vmatprep.subr.mxu0 0.0
    %213 = vmatpush1.msra.mxu0 %v186
    %214 = vmatprep.subr.mxu0 0.0
    %215 = vmatpush1.msra.mxu0 %v187
    %216 = vmatprep.subr.mxu0 0.0
    %217 = vmatpush1.msra.mxu0 %v188
    %218 = vmatprep.subr.mxu0 0.0
    %219 = vmatpush1.msra.mxu0 %v189
    %220 = vmatprep.subr.mxu0 0.0
    %221 = vmatpush1.msra.mxu0 %v190
    %222 = vmatprep.subr.mxu0 0.0
    %223 = vmatpush1.msra.mxu0 %v191
    %224 = vmatprep.subr.mxu0 0.0
    %225 = vmatpush1.msra.mxu0 0.0
    %226 = vmatprep.subr.mxu0 0.0
    %227 = vmatpush1.msra.mxu0 0.0
    %228 = vmatprep.subr.mxu0 0.0
    %229 = vmatpush1.msra.mxu0 0.0
    %230 = vmatprep.subr.mxu0 0.0
    %231 = vmatpush1.msra.mxu0 0.0
    %232 = vmatprep.subr.mxu0 0.0
    %233 = vmatpush1.msra.mxu0 0.0
    %234 = vmatprep.subr.mxu0 0.0
    %235 = vmatpush1.msra.mxu0 0.0
    %236 = vmatprep.subr.mxu0 0.0
    %237 = vmatpush1.msra.mxu0 0.0
    %238 = vmatprep.subr.mxu0 0.0
    %239 = vmatpush1.msra.mxu0 0.0
    %240 = vmatprep.subr.mxu0 0.0
    %241 = vmatpush1.msra.mxu0 0.0
    %242 = vmatprep.subr.mxu0 0.0
    %243 = vmatpush1.msra.mxu0 0.0
    %244 = vmatprep.subr.mxu0 0.0
    %245 = vmatpush1.msra.mxu0 0.0
    %246 = vmatprep.subr.mxu0 0.0
    %247 = vmatpush1.msra.mxu0 0.0
    %248 = vmatprep.subr.mxu0 0.0
    %249 = vmatpush1.msra.mxu0 0.0
    %250 = vmatprep.subr.mxu0 0.0
    %251 = vmatpush1.msra.mxu0 0.0
    %252 = vmatprep.subr.mxu0 0.0
    %253 = vmatpush1.msra.mxu0 0.0
    %254 = vmatprep.subr.mxu0 0.0
    %255 = vmatpush1.msra.mxu0 0.0
    %256 = vmatprep.mubr.f32.mxu0 0.0
    %257 = vmatmul.mubr.f32.gmra.mrb[0].mxu0 %v172
    %v258 = vpop.f32.mrb[0].mxu0
    %v259 = vadd.f32 0.0, %v258
    %v260 = vpop.f32.mrb[0].mxu0
    %261 = vmatprep.mubr.f32.mxu0 0.0
    %262 = vmatmul.mubr.f32.gmra.mrb[0].mxu0 %v173
    %v263 = vpop.f32.mrb[0].mxu0
    %v264 = vadd.f32 0.0, %v263
    %v265 = vpop.f32.mrb[0].mxu0
    %266 = vdwg.mxu0
    %v267 = vadd.f32 %v174, %v259
    %v268 = vadd.f32 %v175, %v264
    %269 = vst [vmem:[#allocation2] sm:$0xff] %v267
    %270 = vst [vmem:[#allocation2 + $0x8] sm:$0xff] %v268
    %v271 = vld [vmem:[#allocation2] sm:$0xff]
    %v272 = vld [vmem:[#allocation2 + $0x8] sm:$0xff]
    %v273 = vld [vmem:[%s4] sm:$0x1]
    %v275 = vlaneseq
    %v276 = vshrl.u32 %v275, 7
    %v277 = vsub.s32 0, %v276
    %v278 = vrot.slane %v273, %v277
    %v280 = vadd.f32 %v271, %v278
    %v281 = vadd.f32 %v272, %v278
    %282 = vst [vmem:[#allocation9] sm:$0xff] %v280
    %283 = vst [vmem:[#allocation9 + $0x8] sm:$0xff] %v281
    // Predicated region
    $region34: #{tpu_custom_call.1} parent=1 // pred_check
      _
    $region35: #{tpu_custom_call.1} parent=1 // pred_check_branch
      %285 = sbr.rel (0) target = $region37
    $region36: #{tpu_custom_call.1} parent=1 // pred_region
      %s287 = ssub.s32 256, 256
      %288 = vsyncadd [#allocation5], %s287
      %s289 = sshll.u32 [#allocation9], 4
      %s290 = int_to_ptr.vmem [resolvable:$true] %s289
      %295 = dma.vmem_to_hbm [thread:$0]  %s290, 256, %s5, [#allocation5], 128, 128, 8
    $region37: #{tpu_custom_call.1} parent=1 // pred_fallthru
      _
    // Predicated region
    $region38: #{tpu_custom_call.1} parent=1 // pred_check
      _
    $region39: #{tpu_custom_call.1} parent=1 // pred_check_branch
      %297 = sbr.rel (0) target = $region41
    $region40: #{tpu_custom_call.1} parent=1 // pred_region
      %298 = dma.done [#allocation5], 256
    $region41: #{tpu_custom_call.1} parent=1 // pred_fallthru
      _
    %299 = vsyncpa [#allocation4], 1
    %300 = vsyncpa [#allocation7], 1
    %301 = vsyncpa [#allocation5], 1

</llo_original>
